<compile_context>
chip_gen: v7x
topology: tpu7x:2x2x1
jax: 0.10.0
libtpu: 0.0.40
codegen_flags: <defaults>
</compile_context>

<pallas_src>
import math
import jax
import jax.numpy as jnp
from jax.experimental import pallas as pl
from jax.experimental.pallas import tpu as pltpu

LN_EPS = 1e-5

_DEFAULT_TM = {"v6e": 1024, "v7x": 512, "v5e": 512, "unknown": 512}


def _round_up(x, m):
    return ((x + m - 1) // m) * m


def _tpu_target():
    """Best-effort (generation, physical VMEM bytes) with safe fallbacks."""
    kind = ""
    try:
        kind = jax.devices()[0].device_kind.lower()
    except Exception:
        pass
    vmem_phys = None
    try:
        vmem_phys = int(pltpu.get_tpu_info().vmem_capacity_bytes)
    except Exception:
        vmem_phys = None
    if "v7" in kind:
        gen = "v7x"
    elif "v6" in kind:
        gen = "v6e"
    elif "v5" in kind:
        gen = "v5e"
    else:
        gen = "unknown"
    if vmem_phys is None:
        vmem_phys = (64 << 20) if gen == "v7x" else (128 << 20)
    return gen, vmem_phys


def _vmem_budget(gen, vmem_phys):
    """Scoped-VMEM ceiling we are willing to request per generation."""
    if gen == "v7x":
        # 64 MiB physical: never ask for all of it (compiler scratch + spills).
        return min(56 << 20, int(0.875 * vmem_phys))
    if gen in ("v6e", "v5e"):
        # 128 MiB physical: lift the old 64 MiB cap.
        return min(104 << 20, int(0.82 * vmem_phys))
    return min(64 << 20, int(0.8 * vmem_phys))


def _vmem_estimate(tm, tnh, d, itemsize):
    """Rough double-buffered VMEM footprint for one (tm, tnh) configuration."""
    return (
        2 * tm * d * itemsize          # x row tiles (double-buffered)
        + 2 * tm * d * itemsize        # out row tiles (double-buffered)
        + 2 * 2 * d * tnh * 2          # W1 + W2 slices (bf16, double-buffered)
        + 2 * (tnh + 3 * d) * 4        # b1 slice, gamma, beta, b2
        + tm * d * 2 + tm * d * 4      # xn cache (bf16) + f32 accumulator
        + 6 * tm * tnh                 # first-matmul out: f32 h + its bf16 copy
    )


def _pick_hidden_tile(h, target):
    """Largest multiple of 128 <= target that divides h; else h (full dim)."""
    if h <= target or h % 128 != 0:
        return h
    t = (target // 128) * 128
    while t >= 128:
        if h % t == 0:
            return t
        t -= 128
    return h


def _ffn_kernel(x_ref, g_ref, b_ref, w1_ref, b1_ref, w2_ref, b2_ref,
                o_ref, xn_ref, acc_ref):
    j = pl.program_id(1)

    @pl.when(j == 0)
    def _():
        # LayerNorm over the feature dim in f32 (matches nn.LayerNorm(dim), eps=1e-5).
        x = x_ref[...].astype(jnp.float32)
        mean = jnp.mean(x, axis=-1, keepdims=True)
        xc = x - mean
        var = jnp.mean(xc * xc, axis=-1, keepdims=True)
        xn = xc * jax.lax.rsqrt(var + LN_EPS)
        xn = xn * g_ref[...].astype(jnp.float32) + b_ref[...].astype(jnp.float32)
        # Cache normalized rows in bf16 for the MXU; reused across hidden slices.
        xn_ref[...] = xn.astype(xn_ref.dtype)
        acc_ref[...] = jnp.zeros_like(acc_ref)

    # Linear(dim, dim*mult), hidden slice j: bf16 MXU inputs, f32 accumulate.
    h = jnp.dot(xn_ref[...], w1_ref[...], preferred_element_type=jnp.float32)
    h = h + b1_ref[...].astype(jnp.float32)

    # GELU (exact, erf-based — PyTorch nn.GELU default), f32 on the VPU/EUP.
    h = 0.5 * h * (1.0 + jax.lax.erf(h * (1.0 / math.sqrt(2.0))))
    # Dropout(p=0.0) is identity — nothing to do.

    # Linear(dim*mult, dim): accumulate this hidden slice's contribution.
    acc_ref[...] += jnp.dot(h.astype(jnp.bfloat16), w2_ref[...],
                            preferred_element_type=jnp.float32)

    @pl.when(j == pl.num_programs(1) - 1)
    def _():
        o_ref[...] = (acc_ref[...] + b2_ref[...].astype(jnp.float32)).astype(o_ref.dtype)


def feedforward_pallas(x, gamma, beta, w1, b1, w2, b2, *, tm=None, tnh=None):
    """x: [B, S, D]. w1: [D, H], w2: [H, D] (PyTorch Linear weights transposed).

    Pass w1/w2 already in bf16 to avoid a per-call cast (extra HBM traffic)."""
    B, S, D = x.shape
    H = w1.shape[1]
    N = B * S
    itemsize = jnp.dtype(x.dtype).itemsize

    gen, vmem_phys = _tpu_target()
    budget = _vmem_budget(gen, vmem_phys)

    # ---- row tile: per-generation roofline default, clamped to the row count ----
    if tm is None:
        tm = _DEFAULT_TM[gen]
    tm = max(8, min(_round_up(tm, 8), _round_up(N, 8)))
    if gen == "v7x" and N > 8:
        # Ensure >= 2 grid steps on the "parallel" row axis so both TCs get work.
        tm = min(tm, _round_up(-(-N // 2), 8))

    # ---- hidden tile: fully resident weights when they fit the VMEM budget ----
    if tnh is None:
        if _vmem_estimate(tm, H, D, itemsize) <= budget:
            tnh = H          # constant W1/W2 index maps => fetched once, stay resident
        else:
            tnh = _pick_hidden_tile(H, 512)
    elif H % tnh != 0 or (tnh != H and tnh % 128 != 0):
        tnh = _pick_hidden_tile(H, tnh)

    # Shrink the row tile if the pair still overflows the budget (rare).
    while tm > 128 and _vmem_estimate(tm, tnh, D, itemsize) > budget:
        tm = max(128, _round_up(tm // 2, 8))
    tm = min(tm, _round_up(N, 8))

    n_pad = _round_up(N, tm)

    x2 = x.reshape(N, D)
    if n_pad != N:
        x2 = jnp.pad(x2, ((0, n_pad - N), (0, 0)))

    g2 = gamma.reshape(1, D)
    be2 = beta.reshape(1, D)
    b1_2 = b1.reshape(1, H)
    b2_2 = b2.reshape(1, D)
    # Cast only if the caller didn't hoist the bf16 cast (avoids extra HBM traffic).
    w1b = w1 if w1.dtype == jnp.bfloat16 else w1.astype(jnp.bfloat16)
    w2b = w2 if w2.dtype == jnp.bfloat16 else w2.astype(jnp.bfloat16)

    est = _vmem_estimate(tm, tnh, D, itemsize)
    vmem_limit = int(min(max(int(1.25 * est), 32 << 20), budget))

    n_row_tiles = n_pad // tm
    # bf16 W1 + W2 bytes, re-streamed per row tile unless resident (tnh == H).
    weight_bytes = (1 if tnh == H else n_row_tiles) * 2 * D * H * 2
    cost = pl.CostEstimate(
        flops=4 * N * D * H,                                   # two N*D*H matmuls
        transcendentals=N * H,                                 # erf in GELU
        bytes_accessed=2 * N * D * itemsize + weight_bytes + (H + 3 * D) * 4,
    )

    grid = (n_row_tiles, H // tnh)

    out = pl.pallas_call(
        _ffn_kernel,
        out_shape=jax.ShapeDtypeStruct((n_pad, D), x.dtype),
        grid_spec=pltpu.PrefetchScalarGridSpec(
            num_scalar_prefetch=0,
            grid=grid,
            in_specs=[
                pl.BlockSpec((tm, D), lambda i, j: (i, 0)),     # x rows
                pl.BlockSpec((1, D), lambda i, j: (0, 0)),      # ln gamma
                pl.BlockSpec((1, D), lambda i, j: (0, 0)),      # ln beta
                pl.BlockSpec((D, tnh), lambda i, j: (0, j)),    # W1 hidden slice
                pl.BlockSpec((1, tnh), lambda i, j: (0, j)),    # b1 hidden slice
                pl.BlockSpec((tnh, D), lambda i, j: (j, 0)),    # W2 hidden slice
                pl.BlockSpec((1, D), lambda i, j: (0, 0)),      # b2
            ],
            out_specs=pl.BlockSpec((tm, D), lambda i, j: (i, 0)),
            scratch_shapes=[
                pltpu.VMEM((tm, D), jnp.bfloat16),   # cached LayerNorm output (bf16)
                pltpu.VMEM((tm, D), jnp.float32),    # f32 output accumulator
            ],
        ),
        compiler_params=pltpu.CompilerParams(
            dimension_semantics=("parallel", "arbitrary"),
            vmem_limit_bytes=vmem_limit,
        ),
        cost_estimate=cost,
    )(x2, g2, be2, w1b, b1_2, w2b, b2_2)

    if n_pad != N:
        out = out[:N]
    return out.reshape(B, S, D)


def feedforward_ref(x, gamma, beta, w1, b1, w2, b2):
    xf = x.astype(jnp.float32)
    mean = jnp.mean(xf, axis=-1, keepdims=True)
    var = jnp.mean((xf - mean) ** 2, axis=-1, keepdims=True)
    xn = (xf - mean) * jax.lax.rsqrt(var + LN_EPS) * gamma + beta
    h = xn @ w1 + b1
    h = 0.5 * h * (1.0 + jax.lax.erf(h / math.sqrt(2.0)))
    return (h @ w2 + b2).astype(x.dtype)


if __name__ == "__main__":
    B, S, D, MULT = 2, 9, 128, 2           # N = 18 rows (exercises tail padding), H = 256
    H = D * MULT

    key = jax.random.PRNGKey(0)
    kx, kg, kb, kw1, kb1, kw2, kb2 = jax.random.split(key, 7)

    x = jax.random.normal(kx, (B, S, D), dtype=jnp.float32)

    gamma = 1.0 + 0.1 * jax.random.normal(kg, (D,), jnp.float32)
    beta = 0.1 * jax.random.normal(kb, (D,), jnp.float32)
    lim1 = 1.0 / math.sqrt(D)
    w1 = jax.random.uniform(kw1, (D, H), jnp.float32, -lim1, lim1)   # [in, out]
    b1 = jax.random.uniform(kb1, (H,), jnp.float32, -lim1, lim1)
    lim2 = 1.0 / math.sqrt(H)
    w2 = jax.random.uniform(kw2, (H, D), jnp.float32, -lim2, lim2)   # [in, out]
    b2 = jax.random.uniform(kb2, (D,), jnp.float32, -lim2, lim2)

    y_ref = feedforward_ref(x, gamma, beta, w1, b1, w2, b2)

    # Hoist the bf16 weight casts out of the per-call path (perf review item).
    w1b = jax.block_until_ready(w1.astype(jnp.bfloat16))
    w2b = jax.block_until_ready(w2.astype(jnp.bfloat16))

    # bf16 MXU operands => compare against the f32 reference with a bf16-level tolerance.
    # Default tiles: weights fully resident (tnh == H), row tile auto-sized per generation.
    y = feedforward_pallas(x, gamma, beta, w1b, b1, w2b, b2)
    y = jax.block_until_ready(y)
    assert jnp.allclose(y, y_ref, atol=3e-2, rtol=3e-2), "mismatch vs reference (default tiles)"

    # Small tiles: exercises row padding (18 -> 24 rows) and hidden-dim accumulation.
    y2 = feedforward_pallas(x, gamma, beta, w1b, b1, w2b, b2, tm=8, tnh=128)
    y2 = jax.block_until_ready(y2)
    assert jnp.allclose(y2, y_ref, atol=3e-2, rtol=3e-2), "mismatch vs reference (small tiles)"

    print("KERNEL_OK")
</pallas_src>

<mosaic_0001>
module attributes {stable_mosaic.version = 11 : i64} {
  func.func @_ffn_kernel(%arg0: i32, %arg1: i32, %arg2: memref<24x128xf32, #tpu.memory_space<vmem>>, %arg3: memref<1x128xf32, #tpu.memory_space<vmem>>, %arg4: memref<1x128xf32, #tpu.memory_space<vmem>>, %arg5: memref<128x256xbf16, #tpu.memory_space<vmem>>, %arg6: memref<1x256xf32, #tpu.memory_space<vmem>>, %arg7: memref<256x128xbf16, #tpu.memory_space<vmem>>, %arg8: memref<1x128xf32, #tpu.memory_space<vmem>>, %arg9: memref<24x128xf32, #tpu.memory_space<vmem>>, %arg10: memref<24x128xbf16, #tpu.memory_space<vmem>>, %arg11: memref<24x128xf32, #tpu.memory_space<vmem>>) attributes {dimension_semantics = [#tpu.dimension_semantics<parallel>, #tpu.dimension_semantics<arbitrary>], iteration_bounds = array<i64: 1, 1>, scalar_prefetch = 0 : i64, scratch_operands = 2 : i64, tpu.core_type = #tpu.core_type<tc>, window_params = [{transform_indices = @transform_0, window_bounds = array<i64: 24, 128>}, {pipeline_mode = #tpu.pipeline_mode<synchronous>, transform_indices = @transform_1, window_bounds = array<i64: 1, 128>}, {pipeline_mode = #tpu.pipeline_mode<synchronous>, transform_indices = @transform_2, window_bounds = array<i64: 1, 128>}, {transform_indices = @transform_3, window_bounds = array<i64: 128, 256>}, {transform_indices = @transform_4, window_bounds = array<i64: 1, 256>}, {transform_indices = @transform_5, window_bounds = array<i64: 256, 128>}, {pipeline_mode = #tpu.pipeline_mode<synchronous>, transform_indices = @transform_6, window_bounds = array<i64: 1, 128>}, {transform_indices = @transform_7, window_bounds = array<i64: 24, 128>}]} {
    %c0_i32 = arith.constant 0 : i32
    %0 = arith.cmpi eq, %arg1, %c0_i32 : i32
    %1 = arith.extui %0 : i1 to i32
    %c0_i32_0 = arith.constant 0 : i32
    %2 = arith.cmpi ne, %1, %c0_i32_0 : i32
    scf.if %2 {
      %c0_18 = arith.constant 0 : index
      %c0_19 = arith.constant 0 : index
      %26 = vector.load %arg2[%c0_18, %c0_19] : memref<24x128xf32, #tpu.memory_space<vmem>>, vector<24x128xf32>
      %cst_20 = arith.constant dense<0.000000e+00> : vector<24xf32>
      %27 = vector.multi_reduction <add>, %26, %cst_20 [1] : vector<24x128xf32> to vector<24xf32>
      %28 = vector.shape_cast %27 : vector<24xf32> to vector<24x1xf32>
      %cst_21 = arith.constant 1.280000e+02 : f32
      %29 = vector.broadcast %cst_21 : f32 to vector<24x1xf32>
      %30 = arith.divf %28, %29 : vector<24x1xf32>
      %31 = vector.broadcast %30 : vector<24x1xf32> to vector<24x128xf32>
      %32 = arith.subf %26, %31 : vector<24x128xf32>
      %33 = arith.mulf %32, %32 : vector<24x128xf32>
      %cst_22 = arith.constant dense<0.000000e+00> : vector<24xf32>
      %34 = vector.multi_reduction <add>, %33, %cst_22 [1] : vector<24x128xf32> to vector<24xf32>
      %35 = vector.shape_cast %34 : vector<24xf32> to vector<24x1xf32>
      %cst_23 = arith.constant 1.280000e+02 : f32
      %36 = vector.broadcast %cst_23 : f32 to vector<24x1xf32>
      %37 = arith.divf %35, %36 : vector<24x1xf32>
      %cst_24 = arith.constant 9.99999974E-6 : f32
      %38 = vector.broadcast %cst_24 : f32 to vector<24x1xf32>
      %39 = arith.addf %37, %38 : vector<24x1xf32>
      %40 = math.rsqrt %39 : vector<24x1xf32>
      %41 = vector.broadcast %40 : vector<24x1xf32> to vector<24x128xf32>
      %42 = arith.mulf %32, %41 : vector<24x128xf32>
      %c0_25 = arith.constant 0 : index
      %c0_26 = arith.constant 0 : index
      %43 = vector.load %arg3[%c0_25, %c0_26] : memref<1x128xf32, #tpu.memory_space<vmem>>, vector<1x128xf32>
      %44 = vector.broadcast %43 : vector<1x128xf32> to vector<24x128xf32>
      %45 = arith.mulf %42, %44 : vector<24x128xf32>
      %c0_27 = arith.constant 0 : index
      %c0_28 = arith.constant 0 : index
      %46 = vector.load %arg4[%c0_27, %c0_28] : memref<1x128xf32, #tpu.memory_space<vmem>>, vector<1x128xf32>
      %47 = vector.broadcast %46 : vector<1x128xf32> to vector<24x128xf32>
      %48 = arith.addf %45, %47 : vector<24x128xf32>
      %49 = arith.truncf %48 : vector<24x128xf32> to vector<24x128xbf16>
      %c0_29 = arith.constant 0 : index
      %c0_30 = arith.constant 0 : index
      %50 = vector.load %arg10[%c0_29, %c0_30] : memref<24x128xbf16, #tpu.memory_space<vmem>>, vector<24x128xbf16>
      tpu.vector_store %arg10[%c0_29, %c0_30], %49 {strides = array<i32>} : memref<24x128xbf16, #tpu.memory_space<vmem>>, vector<24x128xbf16>,
      %cst_31 = arith.constant 0.000000e+00 : f32
      %51 = vector.broadcast %cst_31 : f32 to vector<24x128xf32>
      %c0_32 = arith.constant 0 : index
      %c0_33 = arith.constant 0 : index
      %52 = vector.load %arg11[%c0_32, %c0_33] : memref<24x128xf32, #tpu.memory_space<vmem>>, vector<24x128xf32>
      tpu.vector_store %arg11[%c0_32, %c0_33], %51 {strides = array<i32>} : memref<24x128xf32, #tpu.memory_space<vmem>>, vector<24x128xf32>,
    } else {
    }
    %c0 = arith.constant 0 : index
    %c0_1 = arith.constant 0 : index
    %3 = vector.load %arg10[%c0, %c0_1] : memref<24x128xbf16, #tpu.memory_space<vmem>>, vector<24x128xbf16>
    %c0_2 = arith.constant 0 : index
    %c0_3 = arith.constant 0 : index
    %4 = vector.load %arg5[%c0_2, %c0_3] : memref<128x256xbf16, #tpu.memory_space<vmem>>, vector<128x256xbf16>
    %cst = arith.constant dense<0.000000e+00> : vector<24x256xf32>
    %5 = tpu.matmul %3, %4, %cst {dimension_numbers = #tpu.dot_dimension_numbers<[1], [0], [0], [1], [0, 0, 1, 1], [], []>} : vector<24x128xbf16>, vector<128x256xbf16>, vector<24x256xf32> -> vector<24x256xf32>
    %c0_4 = arith.constant 0 : index
    %c0_5 = arith.constant 0 : index
    %6 = vector.load %arg6[%c0_4, %c0_5] : memref<1x256xf32, #tpu.memory_space<vmem>>, vector<1x256xf32>
    %7 = vector.broadcast %6 : vector<1x256xf32> to vector<24x256xf32>
    %8 = arith.addf %5, %7 : vector<24x256xf32>
    %cst_6 = arith.constant 5.000000e-01 : f32
    %9 = vector.broadcast %cst_6 : f32 to vector<24x256xf32>
    %10 = arith.mulf %9, %8 : vector<24x256xf32>
    %cst_7 = arith.constant 0.707106769 : f32
    %11 = vector.broadcast %cst_7 : f32 to vector<24x256xf32>
    %12 = arith.mulf %8, %11 : vector<24x256xf32>
    %13 = math.erf %12 : vector<24x256xf32>
    %cst_8 = arith.constant 1.000000e+00 : f32
    %14 = vector.broadcast %cst_8 : f32 to vector<24x256xf32>
    %15 = arith.addf %14, %13 : vector<24x256xf32>
    %16 = arith.mulf %10, %15 : vector<24x256xf32>
    %c0_9 = arith.constant 0 : index
    %c0_10 = arith.constant 0 : index
    %17 = vector.load %arg11[%c0_9, %c0_10] : memref<24x128xf32, #tpu.memory_space<vmem>>, vector<24x128xf32>
    %18 = arith.truncf %16 : vector<24x256xf32> to vector<24x256xbf16>
    %c0_11 = arith.constant 0 : index
    %c0_12 = arith.constant 0 : index
    %19 = vector.load %arg7[%c0_11, %c0_12] : memref<256x128xbf16, #tpu.memory_space<vmem>>, vector<256x128xbf16>
    %cst_13 = arith.constant dense<0.000000e+00> : vector<24x128xf32>
    %20 = tpu.matmul %18, %19, %cst_13 {dimension_numbers = #tpu.dot_dimension_numbers<[1], [0], [0], [1], [0, 0, 1, 1], [], []>} : vector<24x256xbf16>, vector<256x128xbf16>, vector<24x128xf32> -> vector<24x128xf32>
    %21 = arith.addf %17, %20 : vector<24x128xf32>
    %c0_14 = arith.constant 0 : index
    %c0_15 = arith.constant 0 : index
    %22 = vector.load %arg11[%c0_14, %c0_15] : memref<24x128xf32, #tpu.memory_space<vmem>>, vector<24x128xf32>
    tpu.vector_store %arg11[%c0_14, %c0_15], %21 {strides = array<i32>} : memref<24x128xf32, #tpu.memory_space<vmem>>, vector<24x128xf32>,
    %c0_i32_16 = arith.constant 0 : i32
    %23 = arith.cmpi eq, %arg1, %c0_i32_16 : i32
    %24 = arith.extui %23 : i1 to i32
    %c0_i32_17 = arith.constant 0 : i32
    %25 = arith.cmpi ne, %24, %c0_i32_17 : i32
    scf.if %25 {
      %c0_18 = arith.constant 0 : index
      %c0_19 = arith.constant 0 : index
      %26 = vector.load %arg11[%c0_18, %c0_19] : memref<24x128xf32, #tpu.memory_space<vmem>>, vector<24x128xf32>
      %c0_20 = arith.constant 0 : index
      %c0_21 = arith.constant 0 : index
      %27 = vector.load %arg8[%c0_20, %c0_21] : memref<1x128xf32, #tpu.memory_space<vmem>>, vector<1x128xf32>
      %28 = vector.broadcast %27 : vector<1x128xf32> to vector<24x128xf32>
      %29 = arith.addf %26, %28 : vector<24x128xf32>
      %c0_22 = arith.constant 0 : index
      %c0_23 = arith.constant 0 : index
      %30 = vector.load %arg9[%c0_22, %c0_23] : memref<24x128xf32, #tpu.memory_space<vmem>>, vector<24x128xf32>
      tpu.vector_store %arg9[%c0_22, %c0_23], %29 {strides = array<i32>} : memref<24x128xf32, #tpu.memory_space<vmem>>, vector<24x128xf32>,
    } else {
    }
    return
  }
  func.func @transform_0(%arg0: i32, %arg1: i32) -> (i32, i32) {
    %c0_i32 = arith.constant 0 : i32
    %c0_i32_0 = arith.constant 0 : i32
    return %arg0, %c0_i32 : i32, i32
  }
  func.func @transform_1(%arg0: i32, %arg1: i32) -> (i32, i32) {
    %c0_i32 = arith.constant 0 : i32
    %c0_i32_0 = arith.constant 0 : i32
    %c0_i32_1 = arith.constant 0 : i32
    return %c0_i32, %c0_i32_0 : i32, i32
  }
  func.func @transform_2(%arg0: i32, %arg1: i32) -> (i32, i32) {
    %c0_i32 = arith.constant 0 : i32
    %c0_i32_0 = arith.constant 0 : i32
    %c0_i32_1 = arith.constant 0 : i32
    return %c0_i32, %c0_i32_0 : i32, i32
  }
  func.func @transform_3(%arg0: i32, %arg1: i32) -> (i32, i32) {
    %c0_i32 = arith.constant 0 : i32
    %c0_i32_0 = arith.constant 0 : i32
    return %c0_i32, %arg1 : i32, i32
  }
  func.func @transform_4(%arg0: i32, %arg1: i32) -> (i32, i32) {
    %c0_i32 = arith.constant 0 : i32
    %c0_i32_0 = arith.constant 0 : i32
    return %c0_i32, %arg1 : i32, i32
  }
  func.func @transform_5(%arg0: i32, %arg1: i32) -> (i32, i32) {
    %c0_i32 = arith.constant 0 : i32
    %c0_i32_0 = arith.constant 0 : i32
    return %arg1, %c0_i32 : i32, i32
  }
  func.func @transform_6(%arg0: i32, %arg1: i32) -> (i32, i32) {
    %c0_i32 = arith.constant 0 : i32
    %c0_i32_0 = arith.constant 0 : i32
    %c0_i32_1 = arith.constant 0 : i32
    return %c0_i32, %c0_i32_0 : i32, i32
  }
  func.func @transform_7(%arg0: i32, %arg1: i32) -> (i32, i32) {
    %c0_i32 = arith.constant 0 : i32
    %c0_i32_0 = arith.constant 0 : i32
    return %arg0, %c0_i32 : i32, i32
  }
}

</mosaic_0001>

<llo_original>
// kernel: tpu_custom_call.1
$region0: #{tpu_custom_call.1}
  #allocation0 [shape = 'u32[]', space=smem, size = 0x4, offset = 0x4, fixed_abs, tag = 'smem constant byte address 0x4 - core index']
  #allocation1 [shape = 'u32[144,128]{1,0:T(1,128)}', space=vmem, size = 0x12000, scoped, tag = 'internal scratch']
  #allocation2 [shape = 'bf16[24,128]{1,0:T(8,128)(2,1)}', space=vmem, size = 0x1800, scoped, tag = 'scratch operand']
  #allocation3 [shape = 'f32[24,128]{1,0:T(8,128)}', space=vmem, size = 0x3000, scoped, tag = 'scratch operand']
  %s0 = inlined_call_operand.hbm [shape: f32[24,128], index: 0, kind: input, shape index: {}]
  %s1 = inlined_call_operand.vmem [shape: f32[1,128], index: 1, kind: input, shape index: {}]
  %s2 = inlined_call_operand.vmem [shape: f32[1,128], index: 2, kind: input, shape index: {}]
  %s3 = inlined_call_operand.hbm [shape: bf16[128,256], index: 3, kind: input, shape index: {}]
  %s4 = inlined_call_operand.vmem [shape: f32[1,256], index: 4, kind: input, shape index: {}]
  %s5 = inlined_call_operand.hbm [shape: bf16[256,128], index: 5, kind: input, shape index: {}]
  %s6 = inlined_call_operand.vmem [shape: f32[1,128], index: 6, kind: input, shape index: {}]
  %s7 = inlined_call_operand.hbm [shape: f32[24,128], index: 7, kind: output, shape index: {}]
  %s8 = sld [smem:[#allocation0]]
  $region58: #{tpu_custom_call.1} parent=0
    _
  %s10 = ssub.s32 1, %s8
  %s11 = scalar_select 0, %s10, %s8
  $region1: #{tpu_custom_call.1} parent=0
    #allocation4 [shape = 'u8[12288]{0}', space=vmem, size = 0x3000, scoped, tag = 'input window, operand 0, single buffered']
    #allocation5 [shape = 's32[1]{0}', space=sflag, size = 0x4, scoped, tag = 'scoped memory for tpu_custom_call.1']
    #allocation6 [shape = 's32[1]{0}', space=sflag, size = 0x4, scoped, tag = 'scoped memory for tpu_custom_call.1']
    #allocation7 [shape = 'u8[65536]{0}', space=vmem, size = 0x10000, scoped, tag = 'input window, operand 3, single buffered']
    #allocation8 [shape = 's32[1]{0}', space=sflag, size = 0x4, scoped, tag = 'scoped memory for tpu_custom_call.1']
    #allocation9 [shape = 'u8[65536]{0}', space=vmem, size = 0x10000, scoped, tag = 'input window, operand 5, single buffered']
    #allocation10 [shape = 'u8[12288]{0}', space=vmem, size = 0x3000, scoped, tag = 'output window, operand 0, single buffered']
    %12 = vsyncpa [#allocation5], 0
    %13 = vsyncpa [#allocation8], 0
    %14 = vsyncpa [#allocation6], 0
    // Predicated region
    $region2: #{tpu_custom_call.1} parent=1 // pred_check
      _
    $region3: #{tpu_custom_call.1} parent=1 // pred_check_branch
      %16 = sbr.rel (0) target = $region5
    $region4: #{tpu_custom_call.1} parent=1 // pred_region
      %s18 = ssub.s32 384, 384
      %19 = vsyncadd [#allocation5], %s18
      %s20 = sshll.u32 [#allocation4], 4
      %s21 = int_to_ptr.vmem [resolvable:$true] %s20
      %26 = dma.hbm_to_vmem [thread:$0]  %s0, 384, %s21, [#allocation5], 128, 128, 8
    $region5: #{tpu_custom_call.1} parent=1 // pred_fallthru
      _
    // Predicated region
    $region6: #{tpu_custom_call.1} parent=1 // pred_check
      _
    $region7: #{tpu_custom_call.1} parent=1 // pred_check_branch
      %28 = sbr.rel (0) target = $region9
    $region8: #{tpu_custom_call.1} parent=1 // pred_region
      _
    $region9: #{tpu_custom_call.1} parent=1 // pred_fallthru
      _
    // Predicated region
    $region10: #{tpu_custom_call.1} parent=1 // pred_check
      _
    $region11: #{tpu_custom_call.1} parent=1 // pred_check_branch
      %30 = sbr.rel (0) target = $region13
    $region12: #{tpu_custom_call.1} parent=1 // pred_region
      _
    $region13: #{tpu_custom_call.1} parent=1 // pred_fallthru
      _
    // Predicated region
    $region14: #{tpu_custom_call.1} parent=1 // pred_check
      _
    $region15: #{tpu_custom_call.1} parent=1 // pred_check_branch
      %32 = sbr.rel (0) target = $region17
    $region16: #{tpu_custom_call.1} parent=1 // pred_region
      %s34 = ssub.s32 2048, 2048
      %35 = vsyncadd [#allocation8], %s34
      %s36 = sshll.u32 [#allocation7], 4
      %s37 = int_to_ptr.vmem [resolvable:$true] %s36
      %42 = dma.hbm_to_vmem [thread:$0]  %s3, 2048, %s37, [#allocation8], 128, 128, 8
    $region17: #{tpu_custom_call.1} parent=1 // pred_fallthru
      _
    // Predicated region
    $region18: #{tpu_custom_call.1} parent=1 // pred_check
      _
    $region19: #{tpu_custom_call.1} parent=1 // pred_check_branch
      %44 = sbr.rel (0) target = $region21
    $region20: #{tpu_custom_call.1} parent=1 // pred_region
      _
    $region21: #{tpu_custom_call.1} parent=1 // pred_fallthru
      _
    // Predicated region
    $region22: #{tpu_custom_call.1} parent=1 // pred_check
      _
    $region23: #{tpu_custom_call.1} parent=1 // pred_check_branch
      %46 = sbr.rel (0) target = $region25
    $region24: #{tpu_custom_call.1} parent=1 // pred_region
      %s48 = ssub.s32 2048, 2048
      %49 = vsyncadd [#allocation8], %s48
      %s50 = sshll.u32 [#allocation9], 4
      %s51 = int_to_ptr.vmem [resolvable:$true] %s50
      %56 = dma.hbm_to_vmem [thread:$0]  %s5, 2048, %s51, [#allocation8], 64, 64, 4
    $region25: #{tpu_custom_call.1} parent=1 // pred_fallthru
      _
    // Predicated region
    $region26: #{tpu_custom_call.1} parent=1 // pred_check
      _
    $region27: #{tpu_custom_call.1} parent=1 // pred_check_branch
      %58 = sbr.rel (0) target = $region29
    $region28: #{tpu_custom_call.1} parent=1 // pred_region
      _
    $region29: #{tpu_custom_call.1} parent=1 // pred_fallthru
      _
    // Predicated region
    $region30: #{tpu_custom_call.1} parent=1 // pred_check
      _
    $region31: #{tpu_custom_call.1} parent=1 // pred_check_branch
      %60 = sbr.rel (0) target = $region33
    $region32: #{tpu_custom_call.1} parent=1 // pred_region
      %61 = dma.done [#allocation5], 384
    $region33: #{tpu_custom_call.1} parent=1 // pred_fallthru
      _
    // Predicated region
    $region34: #{tpu_custom_call.1} parent=1 // pred_check
      _
    $region35: #{tpu_custom_call.1} parent=1 // pred_check_branch
      %63 = sbr.rel (0) target = $region37
    $region36: #{tpu_custom_call.1} parent=1 // pred_region
      %64 = dma.done [#allocation8], 2048
    $region37: #{tpu_custom_call.1} parent=1 // pred_fallthru
      _
    // Predicated region
    $region38: #{tpu_custom_call.1} parent=1 // pred_check
      _
    $region39: #{tpu_custom_call.1} parent=1 // pred_check_branch
      %66 = sbr.rel (0) target = $region41
    $region40: #{tpu_custom_call.1} parent=1 // pred_region
      %67 = dma.done [#allocation8], 2048
    $region41: #{tpu_custom_call.1} parent=1 // pred_fallthru
      _
    %p69 = scmp.eq.s32.totalorder 0, 0
    // Predicated region
    $region42: #{tpu_custom_call.1} parent=1 // pred_check
      %p70 = pneg %p69
    $region43: #{tpu_custom_call.1} parent=1 // pred_check_branch
      %72 = sbr.rel (%p70) target = $region45
    $region44: #{tpu_custom_call.1} parent=1 // pred_region
      %v73 = vld [vmem:[#allocation4] sm:$0xff]
      %v74 = vld [vmem:[#allocation4 + $0x8] sm:$0xff]
      %v75 = vld [vmem:[#allocation4 + $0x10] sm:$0xff]
      %76 = vadd.xlane.f32.xlu0 %v73
      %v77 = vpop.xlane.xlu0 %76
      %78 = vadd.xlane.f32.xlu0 %v74
      %v79 = vpop.xlane.xlu0 %78
      %80 = vadd.xlane.f32.xlu0 %v75
      %v81 = vpop.xlane.xlu0 %80
      %v82 = vrcp.pop 128.0
      %v83 = vmul.f32 %v77, %v82
      %v84 = vmul.f32 %v79, %v82
      %v85 = vmul.f32 %v81, %v82
      %v86 = vsub.f32 %v73, %v83
      %v87 = vsub.f32 %v74, %v84
      %v88 = vsub.f32 %v75, %v85
      %v89 = vmul.f32 %v86, %v86
      %v90 = vmul.f32 %v87, %v87
      %v91 = vmul.f32 %v88, %v88
      %92 = vadd.xlane.f32.xlu0 %v89
      %v93 = vpop.xlane.xlu0 %92
      %94 = vadd.xlane.f32.xlu0 %v90
      %v95 = vpop.xlane.xlu0 %94
      %96 = vadd.xlane.f32.xlu0 %v91
      %v97 = vpop.xlane.xlu0 %96
      %v98 = vmul.f32 %v93, %v82
      %v99 = vmul.f32 %v95, %v82
      %v100 = vmul.f32 %v97, %v82
      %v101 = vadd.f32 %v98, 1e-05
      %v102 = vadd.f32 %v99, 1e-05
      %v103 = vadd.f32 %v100, 1e-05
      %v104 = vrsqrt.pop %v101
      %v105 = vrsqrt.pop %v102
      %v106 = vrsqrt.pop %v103
      %v107 = vmul.f32 %v86, %v104
      %v108 = vmul.f32 %v87, %v105
      %v109 = vmul.f32 %v88, %v106
      %v110 = vld [vmem:[%s1] sm:$0x1]
      %v112 = vlaneseq
      %v113 = vshrl.u32 %v112, 7
      %v114 = vsub.s32 0, %v113
      %v115 = vrot.slane %v110, %v114
      %v117 = vmul.f32 %v107, %v115
      %v118 = vmul.f32 %v108, %v115
      %v119 = vmul.f32 %v109, %v115
      %v120 = vld [vmem:[%s2] sm:$0x1]
      %v122 = vlaneseq
      %v123 = vshrl.u32 %v122, 7
      %v124 = vsub.s32 0, %v123
      %v125 = vrot.slane %v120, %v124
      %v127 = vadd.f32 %v117, %v125
      %v128 = vadd.f32 %v118, %v125
      %v129 = vadd.f32 %v119, %v125
      %v130 = vpack.c.bf16 %v128, %v127
      %v131 = vpack.c.bf16 %v129, %v129
      %v134 = vunpack.c.l.b16 %v130
      %v135 = vunpack.c.h.b16 %v130
      %v136 = vunpack.c.l.b16 %v131
      %v137 = vpack.c.b16 %v134, %v134
      %v138 = vpack.c.b16 %v135, %v135
      %v139 = vpack.c.b16 %v136, %v136
      %143 = vst [vmem:[#allocation2] sm:$0xf] %v137
      %144 = vst [vmem:[#allocation2 + $0x4] sm:$0xf] %v138
      %145 = vst [vmem:[#allocation2 + $0x8] sm:$0xf] %v139
      %146 = vst [vmem:[#allocation3] sm:$0xff] 0.0
      %147 = vst [vmem:[#allocation3 + $0x8] sm:$0xff] 0.0
      %148 = vst [vmem:[#allocation3 + $0x10] sm:$0xff] 0.0
    $region45: #{tpu_custom_call.1} parent=1 // pred_fallthru
      _
    %v149 = vld [vmem:[#allocation2] sm:$0xf]
    %v150 = vld [vmem:[#allocation2 + $0x4] sm:$0xf]
    %v151 = vld [vmem:[#allocation2 + $0x8] sm:$0xf]
    %v152 = vld [vmem:[#allocation7] sm:$0xff]
    %v153 = vld [vmem:[#allocation7 + $0x8] sm:$0xff]
    %v154 = vld [vmem:[#allocation7 + $0x10] sm:$0xff]
    %v155 = vld [vmem:[#allocation7 + $0x18] sm:$0xff]
    %v156 = vld [vmem:[#allocation7 + $0x20] sm:$0xff]
    %v157 = vld [vmem:[#allocation7 + $0x28] sm:$0xff]
    %v158 = vld [vmem:[#allocation7 + $0x30] sm:$0xff]
    %v159 = vld [vmem:[#allocation7 + $0x38] sm:$0xff]
    %v160 = vld [vmem:[#allocation7 + $0x40] sm:$0xff]
    %v161 = vld [vmem:[#allocation7 + $0x48] sm:$0xff]
    %v162 = vld [vmem:[#allocation7 + $0x50] sm:$0xff]
    %v163 = vld [vmem:[#allocation7 + $0x58] sm:$0xff]
    %v164 = vld [vmem:[#allocation7 + $0x60] sm:$0xff]
    %v165 = vld [vmem:[#allocation7 + $0x68] sm:$0xff]
    %v166 = vld [vmem:[#allocation7 + $0x70] sm:$0xff]
    %v167 = vld [vmem:[#allocation7 + $0x78] sm:$0xff]
    %v168 = vld [vmem:[%s4] sm:$0x3]
    %v170 = vlaneseq
    %v171 = vshrl.u32 %v170, 7
    %v172 = vsub.s32 0, %v171
    %v173 = vrot.slane %v168, %v172
    %v174 = vlaneseq
    %v175 = vshrl.u32 %v174, 7
    %v176 = vsub.s32 1, %v175
    %v177 = vrot.slane %v168, %v176
    %v183 = vunpack.c.l.b16 %v149
    %v184 = vunpack.c.l.b16 %v150
    %v185 = vunpack.c.l.b16 %v151
    %v186 = vpack.c.b16 %v184, %v183
    %v187 = vpack.c.b16 %v185, %v185
    %v206 = vunpack.c.l.b16 %v152
    %v207 = vunpack.c.h.b16 %v152
    %v208 = vunpack.c.l.b16 %v153
    %v209 = vunpack.c.h.b16 %v153
    %v210 = vunpack.c.l.b16 %v154
    %v211 = vunpack.c.h.b16 %v154
    %v212 = vunpack.c.l.b16 %v155
    %v213 = vunpack.c.h.b16 %v155
    %v214 = vunpack.c.l.b16 %v156
    %v215 = vunpack.c.h.b16 %v156
    %v216 = vunpack.c.l.b16 %v157
    %v217 = vunpack.c.h.b16 %v157
    %v218 = vunpack.c.l.b16 %v158
    %v219 = vunpack.c.h.b16 %v158
    %v220 = vunpack.c.l.b16 %v159
    %v221 = vunpack.c.h.b16 %v159
    %v222 = vunpack.c.l.b16 %v160
    %v223 = vunpack.c.h.b16 %v160
    %v224 = vunpack.c.l.b16 %v161
    %v225 = vunpack.c.h.b16 %v161
    %v226 = vunpack.c.l.b16 %v162
    %v227 = vunpack.c.h.b16 %v162
    %v228 = vunpack.c.l.b16 %v163
    %v229 = vunpack.c.h.b16 %v163
    %v230 = vunpack.c.l.b16 %v164
    %v231 = vunpack.c.h.b16 %v164
    %v232 = vunpack.c.l.b16 %v165
    %v233 = vunpack.c.h.b16 %v165
    %v234 = vunpack.c.l.b16 %v166
    %v235 = vunpack.c.h.b16 %v166
    %v236 = vunpack.c.l.b16 %v167
    %v237 = vunpack.c.h.b16 %v167
    %v238 = vpack.c.b16 %v208, %v206
    %v239 = vpack.c.b16 %v209, %v207
    %v240 = vpack.c.b16 %v212, %v210
    %v241 = vpack.c.b16 %v213, %v211
    %v242 = vpack.c.b16 %v216, %v214
    %v243 = vpack.c.b16 %v217, %v215
    %v244 = vpack.c.b16 %v220, %v218
    %v245 = vpack.c.b16 %v221, %v219
    %v246 = vpack.c.b16 %v224, %v222
    %v247 = vpack.c.b16 %v225, %v223
    %v248 = vpack.c.b16 %v228, %v226
    %v249 = vpack.c.b16 %v229, %v227
    %v250 = vpack.c.b16 %v232, %v230
    %v251 = vpack.c.b16 %v233, %v231
    %v252 = vpack.c.b16 %v236, %v234
    %v253 = vpack.c.b16 %v237, %v235
    %270 = vmatprep.subr.bf16.mxu0 %v239
    %271 = vmatpush1.bf16.msra.mxu0 %v238
    %272 = vmatprep.subr.bf16.mxu0 %v241
    %273 = vmatpush1.bf16.msra.mxu0 %v240
    %274 = vmatprep.subr.bf16.mxu0 %v243
    %275 = vmatpush1.bf16.msra.mxu0 %v242
    %276 = vmatprep.subr.bf16.mxu0 %v245
    %277 = vmatpush1.bf16.msra.mxu0 %v244
    %278 = vmatprep.subr.bf16.mxu0 %v247
    %279 = vmatpush1.bf16.msra.mxu0 %v246
    %280 = vmatprep.subr.bf16.mxu0 %v249
    %281 = vmatpush1.bf16.msra.mxu0 %v248
    %282 = vmatprep.subr.bf16.mxu0 %v251
    %283 = vmatpush1.bf16.msra.mxu0 %v250
    %284 = vmatprep.subr.bf16.mxu0 %v253
    %285 = vmatpush1.bf16.msra.mxu0 %v252
    %286 = vmatprep.subr.bf16.mxu0 0
    %287 = vmatpush1.bf16.msra.mxu0 0
    %288 = vmatprep.subr.bf16.mxu0 0
    %289 = vmatpush1.bf16.msra.mxu0 0
    %290 = vmatprep.subr.bf16.mxu0 0
    %291 = vmatpush1.bf16.msra.mxu0 0
    %292 = vmatprep.subr.bf16.mxu0 0
    %293 = vmatpush1.bf16.msra.mxu0 0
    %294 = vmatprep.subr.bf16.mxu0 0
    %295 = vmatpush1.bf16.msra.mxu0 0
    %296 = vmatprep.subr.bf16.mxu0 0
    %297 = vmatpush1.bf16.msra.mxu0 0
    %298 = vmatprep.subr.bf16.mxu0 0
    %299 = vmatpush1.bf16.msra.mxu0 0
    %300 = vmatprep.subr.bf16.mxu0 0
    %301 = vmatpush1.bf16.msra.mxu0 0
    %302 = vmatprep.mubr.bf16.mxu0 0
    %303 = vmatmul.mubr.bf16.gmra.mrb[0].mxu0 %v186
    %v304 = vpop.f32.mrb[0].mxu0
    %v305 = vadd.f32 %v173, %v304
    %v306 = vpop.f32.mrb[0].mxu0
    %v307 = vadd.f32 %v177, %v306
    %v308 = vpop.f32.mrb[0].mxu0
    %v309 = vadd.f32 %v173, %v308
    %v310 = vpop.f32.mrb[0].mxu0
    %v311 = vadd.f32 %v177, %v310
    %312 = vmatprep.mubr.bf16.mxu0 0
    %313 = vmatmul.mubr.bf16.gmra.mrb[0].mxu0 %v187
    %v314 = vpop.f32.mrb[0].mxu0
    %v315 = vadd.f32 %v173, %v314
    %v316 = vpop.f32.mrb[0].mxu0
    %v317 = vadd.f32 %v177, %v316
    %v318 = vpop.f32.mrb[0].mxu0
    %v319 = vpop.f32.mrb[0].mxu0
    %320 = vdwg.mxu0
    %v321 = vmul.f32 %v305, 0.5
    %v322 = vmul.f32 %v307, 0.5
    %v323 = vmul.f32 %v309, 0.5
    %v324 = vmul.f32 %v311, 0.5
    %v325 = vmul.f32 %v315, 0.5
    %v326 = vmul.f32 %v317, 0.5
    %v327 = vmul.f32 %v305, 0.70710677
    %v328 = vmul.f32 %v307, 0.70710677
    %v329 = vmul.f32 %v309, 0.70710677
    %v330 = vmul.f32 %v311, 0.70710677
    %v331 = vmul.f32 %v315, 0.70710677
    %v332 = vmul.f32 %v317, 0.70710677
    %v333 = verf.f32.pop %v327
    %v334 = verf.f32.pop %v328
    %v335 = verf.f32.pop %v329
    %v336 = verf.f32.pop %v330
    %v337 = verf.f32.pop %v331
    %v338 = verf.f32.pop %v332
    %v339 = vadd.f32 %v333, 1.0
    %v340 = vadd.f32 %v334, 1.0
    %v341 = vadd.f32 %v335, 1.0
    %v342 = vadd.f32 %v336, 1.0
    %v343 = vadd.f32 %v337, 1.0
    %v344 = vadd.f32 %v338, 1.0
    %v345 = vmul.f32 %v321, %v339
    %v346 = vmul.f32 %v322, %v340
    %v347 = vmul.f32 %v323, %v341
    %v348 = vmul.f32 %v324, %v342
    %v349 = vmul.f32 %v325, %v343
    %v350 = vmul.f32 %v326, %v344
    %v351 = vld [vmem:[#allocation3] sm:$0xff]
    %v352 = vld [vmem:[#allocation3 + $0x8] sm:$0xff]
    %v353 = vld [vmem:[#allocation3 + $0x10] sm:$0xff]
    %v354 = vpack.c.bf16 %v347, %v345
    %v355 = vpack.c.bf16 %v348, %v346
    %v356 = vpack.c.bf16 %v349, %v349
    %v357 = vpack.c.bf16 %v350, %v350
    %v358 = vld [vmem:[#allocation9] sm:$0xf]
    %v359 = vld [vmem:[#allocation9 + $0x4] sm:$0xf]
    %v360 = vld [vmem:[#allocation9 + $0x8] sm:$0xf]
    %v361 = vld [vmem:[#allocation9 + $0xc] sm:$0xf]
    %v362 = vld [vmem:[#allocation9 + $0x10] sm:$0xf]
    %v363 = vld [vmem:[#allocation9 + $0x14] sm:$0xf]
    %v364 = vld [vmem:[#allocation9 + $0x18] sm:$0xf]
    %v365 = vld [vmem:[#allocation9 + $0x1c] sm:$0xf]
    %v366 = vld [vmem:[#allocation9 + $0x20] sm:$0xf]
    %v367 = vld [vmem:[#allocation9 + $0x24] sm:$0xf]
    %v368 = vld [vmem:[#allocation9 + $0x28] sm:$0xf]
    %v369 = vld [vmem:[#allocation9 + $0x2c] sm:$0xf]
    %v370 = vld [vmem:[#allocation9 + $0x30] sm:$0xf]
    %v371 = vld [vmem:[#allocation9 + $0x34] sm:$0xf]
    %v372 = vld [vmem:[#allocation9 + $0x38] sm:$0xf]
    %v373 = vld [vmem:[#allocation9 + $0x3c] sm:$0xf]
    %v374 = vld [vmem:[#allocation9 + $0x40] sm:$0xf]
    %v375 = vld [vmem:[#allocation9 + $0x44] sm:$0xf]
    %v376 = vld [vmem:[#allocation9 + $0x48] sm:$0xf]
    %v377 = vld [vmem:[#allocation9 + $0x4c] sm:$0xf]
    %v378 = vld [vmem:[#allocation9 + $0x50] sm:$0xf]
    %v379 = vld [vmem:[#allocation9 + $0x54] sm:$0xf]
    %v380 = vld [vmem:[#allocation9 + $0x58] sm:$0xf]
    %v381 = vld [vmem:[#allocation9 + $0x5c] sm:$0xf]
    %v382 = vld [vmem:[#allocation9 + $0x60] sm:$0xf]
    %v383 = vld [vmem:[#allocation9 + $0x64] sm:$0xf]
    %v384 = vld [vmem:[#allocation9 + $0x68] sm:$0xf]
    %v385 = vld [vmem:[#allocation9 + $0x6c] sm:$0xf]
    %v386 = vld [vmem:[#allocation9 + $0x70] sm:$0xf]
    %v387 = vld [vmem:[#allocation9 + $0x74] sm:$0xf]
    %v388 = vld [vmem:[#allocation9 + $0x78] sm:$0xf]
    %v389 = vld [vmem:[#allocation9 + $0x7c] sm:$0xf]
    %v422 = vunpack.c.l.b16 %v358
    %v423 = vunpack.c.l.b16 %v359
    %v424 = vunpack.c.l.b16 %v360
    %v425 = vunpack.c.l.b16 %v361
    %v426 = vunpack.c.l.b16 %v362
    %v427 = vunpack.c.l.b16 %v363
    %v428 = vunpack.c.l.b16 %v364
    %v429 = vunpack.c.l.b16 %v365
    %v430 = vunpack.c.l.b16 %v366
    %v431 = vunpack.c.l.b16 %v367
    %v432 = vunpack.c.l.b16 %v368
    %v433 = vunpack.c.l.b16 %v369
    %v434 = vunpack.c.l.b16 %v370
    %v435 = vunpack.c.l.b16 %v371
    %v436 = vunpack.c.l.b16 %v372
    %v437 = vunpack.c.l.b16 %v373
    %v438 = vunpack.c.l.b16 %v374
    %v439 = vunpack.c.l.b16 %v375
    %v440 = vunpack.c.l.b16 %v376
    %v441 = vunpack.c.l.b16 %v377
    %v442 = vunpack.c.l.b16 %v378
    %v443 = vunpack.c.l.b16 %v379
    %v444 = vunpack.c.l.b16 %v380
    %v445 = vunpack.c.l.b16 %v381
    %v446 = vunpack.c.l.b16 %v382
    %v447 = vunpack.c.l.b16 %v383
    %v448 = vunpack.c.l.b16 %v384
    %v449 = vunpack.c.l.b16 %v385
    %v450 = vunpack.c.l.b16 %v386
    %v451 = vunpack.c.l.b16 %v387
    %v452 = vunpack.c.l.b16 %v388
    %v453 = vunpack.c.l.b16 %v389
    %v454 = vpack.c.b16 %v423, %v422
    %v455 = vpack.c.b16 %v425, %v424
    %v456 = vpack.c.b16 %v427, %v426
    %v457 = vpack.c.b16 %v429, %v428
    %v458 = vpack.c.b16 %v431, %v430
    %v459 = vpack.c.b16 %v433, %v432
    %v460 = vpack.c.b16 %v435, %v434
    %v461 = vpack.c.b16 %v437, %v436
    %v462 = vpack.c.b16 %v439, %v438
    %v463 = vpack.c.b16 %v441, %v440
    %v464 = vpack.c.b16 %v443, %v442
    %v465 = vpack.c.b16 %v445, %v444
    %v466 = vpack.c.b16 %v447, %v446
    %v467 = vpack.c.b16 %v449, %v448
    %v468 = vpack.c.b16 %v451, %v450
    %v469 = vpack.c.b16 %v453, %v452
    %486 = vmatprep.subr.bf16.mxu0 0
    %487 = vmatpush1.bf16.msra.mxu0 %v454
    %488 = vmatprep.subr.bf16.mxu0 0
    %489 = vmatpush1.bf16.msra.mxu0 %v455
    %490 = vmatprep.subr.bf16.mxu0 0
    %491 = vmatpush1.bf16.msra.mxu0 %v456
    %492 = vmatprep.subr.bf16.mxu0 0
    %493 = vmatpush1.bf16.msra.mxu0 %v457
    %494 = vmatprep.subr.bf16.mxu0 0
    %495 = vmatpush1.bf16.msra.mxu0 %v458
    %496 = vmatprep.subr.bf16.mxu0 0
    %497 = vmatpush1.bf16.msra.mxu0 %v459
    %498 = vmatprep.subr.bf16.mxu0 0
    %499 = vmatpush1.bf16.msra.mxu0 %v460
    %500 = vmatprep.subr.bf16.mxu0 0
    %501 = vmatpush1.bf16.msra.mxu0 %v461
    %502 = vmatprep.subr.bf16.mxu0 0
    %503 = vmatpush1.bf16.msra.mxu0 %v462
    %504 = vmatprep.subr.bf16.mxu0 0
    %505 = vmatpush1.bf16.msra.mxu0 %v463
    %506 = vmatprep.subr.bf16.mxu0 0
    %507 = vmatpush1.bf16.msra.mxu0 %v464
    %508 = vmatprep.subr.bf16.mxu0 0
    %509 = vmatpush1.bf16.msra.mxu0 %v465
    %510 = vmatprep.subr.bf16.mxu0 0
    %511 = vmatpush1.bf16.msra.mxu0 %v466
    %512 = vmatprep.subr.bf16.mxu0 0
    %513 = vmatpush1.bf16.msra.mxu0 %v467
    %514 = vmatprep.subr.bf16.mxu0 0
    %515 = vmatpush1.bf16.msra.mxu0 %v468
    %516 = vmatprep.subr.bf16.mxu0 0
    %517 = vmatpush1.bf16.msra.mxu0 %v469
    %518 = vmatprep.mubr.bf16.mxu0 %v355
    %519 = vmatmul.mubr.bf16.gmra.mrb[0].mxu0 %v354
    %v520 = vpop.f32.mrb[0].mxu0
    %v521 = vadd.f32 0.0, %v520
    %v522 = vpop.f32.mrb[0].mxu0
    %v523 = vpop.f32.mrb[0].mxu0
    %v524 = vadd.f32 0.0, %v523
    %v525 = vpop.f32.mrb[0].mxu0
    %526 = vmatprep.mubr.bf16.mxu0 %v357
    %527 = vmatmul.mubr.bf16.gmra.mrb[0].mxu0 %v356
    %v528 = vpop.f32.mrb[0].mxu0
    %v529 = vadd.f32 0.0, %v528
    %v530 = vpop.f32.mrb[0].mxu0
    %v531 = vpop.f32.mrb[0].mxu0
    %v532 = vpop.f32.mrb[0].mxu0
    %533 = vdwg.mxu0
    %v534 = vadd.f32 %v351, %v521
    %v535 = vadd.f32 %v352, %v524
    %v536 = vadd.f32 %v353, %v529
    %537 = vst [vmem:[#allocation3] sm:$0xff] %v534
    %538 = vst [vmem:[#allocation3 + $0x8] sm:$0xff] %v535
    %539 = vst [vmem:[#allocation3 + $0x10] sm:$0xff] %v536
    // Predicated region
    $region46: #{tpu_custom_call.1} parent=1 // pred_check
      %p540 = pneg %p69
    $region47: #{tpu_custom_call.1} parent=1 // pred_check_branch
      %542 = sbr.rel (%p540) target = $region49
    $region48: #{tpu_custom_call.1} parent=1 // pred_region
      %v543 = vld [vmem:[#allocation3] sm:$0xff]
      %v544 = vld [vmem:[#allocation3 + $0x8] sm:$0xff]
      %v545 = vld [vmem:[#allocation3 + $0x10] sm:$0xff]
      %v546 = vld [vmem:[%s6] sm:$0x1]
      %v548 = vlaneseq
      %v549 = vshrl.u32 %v548, 7
      %v550 = vsub.s32 0, %v549
      %v551 = vrot.slane %v546, %v550
      %v553 = vadd.f32 %v543, %v551
      %v554 = vadd.f32 %v544, %v551
      %v555 = vadd.f32 %v545, %v551
      %556 = vst [vmem:[#allocation10] sm:$0xff] %v553
      %557 = vst [vmem:[#allocation10 + $0x8] sm:$0xff] %v554
      %558 = vst [vmem:[#allocation10 + $0x10] sm:$0xff] %v555
    $region49: #{tpu_custom_call.1} parent=1 // pred_fallthru
      _
    // Predicated region
    $region50: #{tpu_custom_call.1} parent=1 // pred_check
      _
    $region51: #{tpu_custom_call.1} parent=1 // pred_check_branch
      %560 = sbr.rel (0) target = $region53
    $region52: #{tpu_custom_call.1} parent=1 // pred_region
      %s562 = ssub.s32 384, 384
      %563 = vsyncadd [#allocation6], %s562
      %s564 = sshll.u32 [#allocation10], 4
      %s565 = int_to_ptr.vmem [resolvable:$true] %s564
      %570 = dma.vmem_to_hbm [thread:$0]  %s565, 384, %s7, [#allocation6], 128, 128, 8
    $region53: #{tpu_custom_call.1} parent=1 // pred_fallthru
      _
    // Predicated region
    $region54: #{tpu_custom_call.1} parent=1 // pred_check
      _
    $region55: #{tpu_custom_call.1} parent=1 // pred_check_branch
      %572 = sbr.rel (0) target = $region57
    $region56: #{tpu_custom_call.1} parent=1 // pred_region
      %573 = dma.done [#allocation6], 384
    $region57: #{tpu_custom_call.1} parent=1 // pred_fallthru
      _
    %574 = vsyncpa [#allocation5], 1
    %575 = vsyncpa [#allocation8], 1
    %576 = vsyncpa [#allocation6], 1

</llo_original>
